<compile_context>
chip_gen: v7x
topology: tpu7x:2x2x1
jax: 0.10.0
libtpu: 0.0.40
codegen_flags: <defaults>
</compile_context>

<pallas_src>
import functools

import jax
import jax.numpy as jnp
import numpy as np
from jax import lax
from jax.experimental import pallas as pl
from jax.experimental.pallas import tpu as pltpu


def _laplacian_loss_kernel(pred_ref, lo_ref, hi_ref, data_ref,
                           mask_x_ref, mask_y_ref, partial_ref, *,
                           inv_dz2, inv_dy2, inv_dx2, D, T, HWp, W):
    s = pl.program_id(1)                              # slab index along z

    f = pred_ref[0].astype(jnp.float32)               # (T, HWp) lane-dense slab
    d = data_ref[0].astype(jnp.float32)               # (T, HWp)
    lo = lo_ref[...].reshape(1, HWp).astype(jnp.float32)   # plane s*T - 1
    hi = hi_ref[...].reshape(1, HWp).astype(jnp.float32)   # plane (s+1)*T

    # --- z neighbour sum -------------------------------------------------
    # Symmetric in-slab rolls give f[i-1] + f[i+1] for interior rows of the
    # slab regardless of roll-direction convention; the two edge rows are
    # patched with the single-plane halos (dummy halos at the volume edges
    # are masked out by the z mask below).
    zsum = pltpu.roll(f, 1, axis=0) + pltpu.roll(f, T - 1, axis=0)
    zrow = lax.broadcasted_iota(jnp.int32, (T, HWp), 0)
    zsum = jnp.where(zrow == 0, lo + f[1:2, :], zsum)
    zsum = jnp.where(zrow == T - 1, f[T - 2:T - 1, :] + hi, zsum)

    # --- x / y neighbour sums (whole-vreg lane rolls on the flat plane) ---
    xsum = pltpu.roll(f, 1, axis=1) + pltpu.roll(f, HWp - 1, axis=1)
    ysum = pltpu.roll(f, W, axis=1) + pltpu.roll(f, HWp - W, axis=1)

    if inv_dz2 == inv_dy2 == inv_dx2:
        # Cubic grid: fold the three stencil terms at trace time.
        lap = (zsum + ysum + xsum - 6.0 * f) * inv_dz2
    else:
        two_f = 2.0 * f
        lap = ((zsum - two_f) * inv_dz2
               + (ysum - two_f) * inv_dy2
               + (xsum - two_f) * inv_dx2)

    # --- boundary masking --------------------------------------------------
    # x / y interior masks are precomputed resident inputs; only the z mask
    # (depends on the slab index) is computed here.
    mx = mask_x_ref[...] != 0.0                        # (1, HWp)
    my = mask_y_ref[...] != 0.0                        # (1, HWp)
    zg = zrow + s * T                                  # global z plane index
    mz = jnp.logical_and(zg >= 1, zg <= D - 2)         # (T, HWp)

    # Laplacian is identically zero outside the full (z, y, x) interior; the
    # MSE slice [:, 0, 1:-1, 1:-1] keeps all x but only interior z, y, so at
    # x boundaries the error is (0 - (-data))^2 = data^2.
    lap = jnp.where(mx, lap, 0.0)
    err = jnp.where(jnp.logical_and(my, mz), lap + d, 0.0)

    # Per-(batch, slab) partial: reduce across sublanes only, keep a
    # lane-dense row (unmasked vst on the store path).
    partial_ref[...] = jnp.sum(err * err, axis=0,
                               keepdims=True).reshape(1, 1, 1, HWp)


def _pick_slab_size(D, HWp, itemsize, vmem_cap, slab_size=None):
    """Largest z-slab that keeps pred+data double buffers well inside VMEM."""
    if slab_size is not None:
        if slab_size == D or (slab_size % 8 == 0 and D % slab_size == 0):
            return int(slab_size)
        raise ValueError("slab_size must divide D and be a multiple of 8 "
                         "(or equal D)")
    # Budget ~ pred + data slabs, double buffered, <= ~35% of physical VMEM.
    budget = min(24 << 20, int(0.35 * vmem_cap))
    t_max = max(8, budget // (4 * HWp * itemsize))
    if D <= t_max:
        return D
    best = None
    for t in range(8, int(min(t_max, D)) + 1, 8):
        if D % t == 0:
            best = t
    return best if best is not None else D   # fallback: full-D slab (legal)


def laplacian_loss(output, data, *, cfg, lapl_weight, data_norm=1.0,
                   slab_size=None):
    """Pallas implementation of LaplacianLoss.forward."""
    g = cfg["globals"]
    dx = (g["xmax"] - g["xmin"]) / g["nnx"]
    dy = (g["ymax"] - g["ymin"]) / g["nny"]
    dz = (g["zmax"] - g["zmin"]) / g["nnz"]
    Lx = g["xmax"] - g["xmin"]
    Ly = g["ymax"] - g["ymin"]
    Lz = g["zmax"] - g["zmin"]

    N, _, D, H, W = output.shape
    assert D >= 3 and H >= 3 and W >= 3, "stencil needs >=3 points per axis"
    HW = H * W
    HWp = ((HW + 127) // 128) * 128        # lane-dense flattened plane

    # Native-dtype, channel-squeezed, lane-flat views (f32 cast is in-kernel).
    pred = output[:, 0].reshape(N, D, HW)
    dat = data[:, 0].reshape(N, D, HW)
    if HWp != HW:
        pred = jnp.pad(pred, ((0, 0), (0, 0), (0, HWp - HW)))
        dat = jnp.pad(dat, ((0, 0), (0, 0), (0, HWp - HW)))
    pred4 = pred.reshape(N, D, 1, HWp)     # single-plane view for z halos

    itemsize = jnp.dtype(pred.dtype).itemsize

    # Generation-aware VMEM capacity (v5e/v6e: 128 MiB, v7x: 64 MiB).
    try:
        vmem_cap = int(pltpu.get_tpu_info().vmem_capacity_bytes)
    except Exception:  # conservative fallback = v7x physical VMEM
        vmem_cap = 64 * 1024 * 1024

    T = _pick_slab_size(D, HWp, itemsize, vmem_cap, slab_size)
    n_slabs = D // T

    # lap(f / c) = lap(f) / c -> fold data_norm and spacings into constants.
    inv_dz2 = float(1.0 / (data_norm * dz * dz))
    inv_dy2 = float(1.0 / (data_norm * dy * dy))
    inv_dx2 = float(1.0 / (data_norm * dx * dx))

    # Host-side interior masks for the flattened (H, W) plane (hoisted out of
    # the kernel; pad lanes are marked invalid).
    j = np.arange(HWp)
    xi = j % W
    yi = j // W
    valid = j < HW
    mask_x = jnp.asarray((valid & (xi >= 1) & (xi <= W - 2))
                         .astype(np.float32)[None, :])
    mask_y = jnp.asarray((valid & (yi >= 1) & (yi <= H - 2))
                         .astype(np.float32)[None, :])

    kernel = functools.partial(
        _laplacian_loss_kernel,
        inv_dz2=inv_dz2, inv_dy2=inv_dy2, inv_dx2=inv_dx2,
        D=D, T=T, HWp=HWp, W=W)

    # Single-plane halo index maps (element index along z since block size 1).
    # Clamped dummies at the volume edges are masked out by the z mask.
    halo_lo_map = lambda n, s: (n, jnp.maximum(s * T - 1, 0), 0, 0)
    halo_hi_map = lambda n, s: (n, jnp.minimum((s + 1) * T, D - 1), 0, 0)

    # VMEM: 2 slabs (pred, data) + 2 halo planes + out row, double buffered,
    # plus resident masks and slack; clamp to <=75% of the chip's VMEM.
    step_bytes = (2 * T * HWp * itemsize + 2 * 8 * HWp * itemsize + HWp * 4)
    vmem_need = 2 * step_bytes + 2 * 2 * HWp * 4 + (4 << 20)
    vmem_limit = int(min(int(0.75 * vmem_cap), max(32 << 20, vmem_need)))

    cost = pl.CostEstimate(
        flops=int(16 * N * D * HWp),
        transcendentals=0,
        bytes_accessed=int((2 * N * D * HWp + 2 * N * n_slabs * HWp) * itemsize
                           + N * n_slabs * HWp * 4 + 2 * HWp * 4),
    )

    partials = pl.pallas_call(
        kernel,
        out_shape=jax.ShapeDtypeStruct((N, n_slabs, 1, HWp), jnp.float32),
        grid_spec=pltpu.PrefetchScalarGridSpec(
            num_scalar_prefetch=0,
            grid=(N, n_slabs),
            in_specs=[
                pl.BlockSpec((1, T, HWp), lambda n, s: (n, s, 0)),     # slab
                pl.BlockSpec((1, 1, 1, HWp), halo_lo_map),             # z-1 halo
                pl.BlockSpec((1, 1, 1, HWp), halo_hi_map),             # z+1 halo
                pl.BlockSpec((1, T, HWp), lambda n, s: (n, s, 0)),     # data slab
                pl.BlockSpec((1, HWp), lambda n, s: (0, 0)),           # x mask
                pl.BlockSpec((1, HWp), lambda n, s: (0, 0)),           # y mask
            ],
            out_specs=pl.BlockSpec((1, 1, 1, HWp), lambda n, s: (n, s, 0, 0)),
        ),
        compiler_params=pltpu.CompilerParams(
            # Both axes independent (per-(batch, slab) outputs, halo-read only)
            # -> megacore can shard within a batch element on v7x.
            dimension_semantics=("parallel", "parallel"),
            vmem_limit_bytes=vmem_limit,
        ),
        cost_estimate=cost,
    )(pred, pred4, pred4, dat, mask_x, mask_y)

    # Glue: mean over the slice laplacian[:, 0, 1:-1, 1:-1] (full x kept).
    count = N * (D - 2) * (H - 2) * W
    mse = jnp.sum(partials) / jnp.float32(max(count, 1))
    return (Lx ** 2) * (Ly ** 2) * (Lz ** 2) * mse * lapl_weight


def _reference_loss(output, data, *, cfg, lapl_weight, data_norm=1.0):
    """Pure-JAX port of the PyTorch reference (for a sanity check)."""
    g = cfg["globals"]
    dx = (g["xmax"] - g["xmin"]) / g["nnx"]
    dy = (g["ymax"] - g["ymin"]) / g["nny"]
    dz = (g["zmax"] - g["zmin"]) / g["nnz"]
    Lx = g["xmax"] - g["xmin"]
    Ly = g["ymax"] - g["ymin"]
    Lz = g["zmax"] - g["zmin"]

    f = output / data_norm
    interior = (
        (f[:, 0, 2:, 1:-1, 1:-1] + f[:, 0, :-2, 1:-1, 1:-1] - 2 * f[:, 0, 1:-1, 1:-1, 1:-1]) / dz ** 2
        + (f[:, 0, 1:-1, 2:, 1:-1] + f[:, 0, 1:-1, :-2, 1:-1] - 2 * f[:, 0, 1:-1, 1:-1, 1:-1]) / dy ** 2
        + (f[:, 0, 1:-1, 1:-1, 2:] + f[:, 0, 1:-1, 1:-1, :-2] - 2 * f[:, 0, 1:-1, 1:-1, 1:-1]) / dx ** 2
    )
    lap = jnp.zeros_like(f).at[:, 0, 1:-1, 1:-1, 1:-1].set(interior)
    diff = lap[:, 0, 1:-1, 1:-1] - (-data[:, 0, 1:-1, 1:-1])
    mse = jnp.mean(diff ** 2)
    return Lx ** 2 * Ly ** 2 * Lz ** 2 * mse * lapl_weight


if __name__ == "__main__":
    # Deterministic synthetic config (stands in for the cfg yaml) and inputs.
    cfg = {
        "globals": {
            "xmin": 0.0, "xmax": 1.0, "nnx": 16,
            "ymin": 0.0, "ymax": 1.0, "nny": 16,
            "zmin": 0.0, "zmax": 1.0, "nnz": 16,
        }
    }
    lapl_weight = 0.1
    data_norm = 2.0

    key = jax.random.PRNGKey(0)
    k1, k2 = jax.random.split(key)
    N, C, D, H, W = 2, 1, 16, 16, 16
    output = jax.random.normal(k1, (N, C, D, H, W), dtype=jnp.float32)
    data = jax.random.normal(k2, (N, C, D, H, W), dtype=jnp.float32)

    ref = jax.block_until_ready(
        _reference_loss(output, data, cfg=cfg, lapl_weight=lapl_weight,
                        data_norm=data_norm))

    # 1) auto slab size (single slab at this tiny volume).
    loss = jax.block_until_ready(
        laplacian_loss(output, data, cfg=cfg, lapl_weight=lapl_weight,
                       data_norm=data_norm))
    # f32 accumulation-order tolerance (different reduction order vs. ref).
    np.testing.assert_allclose(np.asarray(loss), np.asarray(ref),
                               rtol=1e-4, atol=1e-6)

    # 2) explicit 2-slab run to exercise the halo / multi-slab pipeline path.
    loss2 = jax.block_until_ready(
        laplacian_loss(output, data, cfg=cfg, lapl_weight=lapl_weight,
                       data_norm=data_norm, slab_size=8))
    np.testing.assert_allclose(np.asarray(loss2), np.asarray(ref),
                               rtol=1e-4, atol=1e-6)

    print("KERNEL_OK")
</pallas_src>

<mosaic_0001>
module attributes {stable_mosaic.version = 11 : i64} {
  func.func @_laplacian_loss_kernel(%arg0: i32, %arg1: i32, %arg2: memref<1x16x256xf32, #tpu.memory_space<vmem>>, %arg3: memref<1x1x1x256xf32, #tpu.memory_space<vmem>>, %arg4: memref<1x1x1x256xf32, #tpu.memory_space<vmem>>, %arg5: memref<1x16x256xf32, #tpu.memory_space<vmem>>, %arg6: memref<1x256xf32, #tpu.memory_space<vmem>>, %arg7: memref<1x256xf32, #tpu.memory_space<vmem>>, %arg8: memref<1x1x1x256xf32, #tpu.memory_space<vmem>>) attributes {dimension_semantics = [#tpu.dimension_semantics<parallel>, #tpu.dimension_semantics<parallel>], iteration_bounds = array<i64: 2, 1>, scalar_prefetch = 0 : i64, scratch_operands = 0 : i64, tpu.core_type = #tpu.core_type<tc>, window_params = [{transform_indices = @transform_0, window_bounds = array<i64: 1, 16, 256>}, {transform_indices = @transform_1, window_bounds = array<i64: 1, 1, 1, 256>}, {transform_indices = @transform_2, window_bounds = array<i64: 1, 1, 1, 256>}, {transform_indices = @transform_3, window_bounds = array<i64: 1, 16, 256>}, {pipeline_mode = #tpu.pipeline_mode<synchronous>, transform_indices = @transform_4, window_bounds = array<i64: 1, 256>}, {pipeline_mode = #tpu.pipeline_mode<synchronous>, transform_indices = @transform_5, window_bounds = array<i64: 1, 256>}, {transform_indices = @transform_6, window_bounds = array<i64: 1, 1, 1, 256>}]} {
    %c0 = arith.constant 0 : index
    %c0_0 = arith.constant 0 : index
    %c0_1 = arith.constant 0 : index
    %0 = vector.load %arg2[%c0, %c0_0, %c0_1] : memref<1x16x256xf32, #tpu.memory_space<vmem>>, vector<1x16x256xf32>
    %1 = vector.shape_cast %0 : vector<1x16x256xf32> to vector<16x256xf32>
    %c0_2 = arith.constant 0 : index
    %c0_3 = arith.constant 0 : index
    %c0_4 = arith.constant 0 : index
    %2 = vector.load %arg5[%c0_2, %c0_3, %c0_4] : memref<1x16x256xf32, #tpu.memory_space<vmem>>, vector<1x16x256xf32>
    %3 = vector.shape_cast %2 : vector<1x16x256xf32> to vector<16x256xf32>
    %c0_5 = arith.constant 0 : index
    %c0_6 = arith.constant 0 : index
    %c0_7 = arith.constant 0 : index
    %c0_8 = arith.constant 0 : index
    %4 = vector.load %arg3[%c0_5, %c0_6, %c0_7, %c0_8] : memref<1x1x1x256xf32, #tpu.memory_space<vmem>>, vector<1x1x1x256xf32>
    %5 = vector.shape_cast %4 : vector<1x1x1x256xf32> to vector<1x256xf32>
    %c0_9 = arith.constant 0 : index
    %c0_10 = arith.constant 0 : index
    %c0_11 = arith.constant 0 : index
    %c0_12 = arith.constant 0 : index
    %6 = vector.load %arg4[%c0_9, %c0_10, %c0_11, %c0_12] : memref<1x1x1x256xf32, #tpu.memory_space<vmem>>, vector<1x1x1x256xf32>
    %7 = vector.shape_cast %6 : vector<1x1x1x256xf32> to vector<1x256xf32>
    %c1_i32 = arith.constant 1 : i32
    %8 = tpu.dynamic_rotate %1 by %c1_i32 dim 0 : vector<16x256xf32>, i32 -> vector<16x256xf32>
    %c15_i32 = arith.constant 15 : i32
    %9 = tpu.dynamic_rotate %1 by %c15_i32 dim 0 : vector<16x256xf32>, i32 -> vector<16x256xf32>
    %10 = arith.addf %8, %9 : vector<16x256xf32>
    %11 = tpu.iota {dimensions = array<i32: 0>} : vector<16x256xi32>
    %c0_i32 = arith.constant 0 : i32
    %12 = vector.broadcast %c0_i32 : i32 to vector<16x256xi32>
    %13 = arith.cmpi eq, %11, %12 : vector<16x256xi32>
    %14 = vector.extract_strided_slice %1 {offsets = [1, 0], sizes = [1, 256], strides = [1, 1]} : vector<16x256xf32> to vector<1x256xf32>
    %15 = arith.addf %5, %14 : vector<1x256xf32>
    %16 = vector.shape_cast %15 : vector<1x256xf32> to vector<1x256xf32>
    %17 = vector.broadcast %16 : vector<1x256xf32> to vector<16x256xf32>
    %18 = arith.select %13, %17, %10 : vector<16x256xi1>, vector<16x256xf32>
    %c15_i32_13 = arith.constant 15 : i32
    %19 = vector.broadcast %c15_i32_13 : i32 to vector<16x256xi32>
    %20 = arith.cmpi eq, %11, %19 : vector<16x256xi32>
    %21 = vector.extract_strided_slice %1 {offsets = [14, 0], sizes = [1, 256], strides = [1, 1]} : vector<16x256xf32> to vector<1x256xf32>
    %22 = arith.addf %21, %7 : vector<1x256xf32>
    %23 = vector.shape_cast %22 : vector<1x256xf32> to vector<1x256xf32>
    %24 = vector.broadcast %23 : vector<1x256xf32> to vector<16x256xf32>
    %25 = arith.select %20, %24, %18 : vector<16x256xi1>, vector<16x256xf32>
    %c1_i32_14 = arith.constant 1 : i32
    %26 = tpu.dynamic_rotate %1 by %c1_i32_14 dim 1 : vector<16x256xf32>, i32 -> vector<16x256xf32>
    %c255_i32 = arith.constant 255 : i32
    %27 = tpu.dynamic_rotate %1 by %c255_i32 dim 1 : vector<16x256xf32>, i32 -> vector<16x256xf32>
    %28 = arith.addf %26, %27 : vector<16x256xf32>
    %c16_i32 = arith.constant 16 : i32
    %29 = tpu.dynamic_rotate %1 by %c16_i32 dim 1 : vector<16x256xf32>, i32 -> vector<16x256xf32>
    %c240_i32 = arith.constant 240 : i32
    %30 = tpu.dynamic_rotate %1 by %c240_i32 dim 1 : vector<16x256xf32>, i32 -> vector<16x256xf32>
    %31 = arith.addf %29, %30 : vector<16x256xf32>
    %32 = arith.addf %25, %31 : vector<16x256xf32>
    %33 = arith.addf %32, %28 : vector<16x256xf32>
    %cst = arith.constant 6.000000e+00 : f32
    %34 = vector.broadcast %cst : f32 to vector<16x256xf32>
    %35 = arith.mulf %34, %1 : vector<16x256xf32>
    %36 = arith.subf %33, %35 : vector<16x256xf32>
    %cst_15 = arith.constant 1.280000e+02 : f32
    %37 = vector.broadcast %cst_15 : f32 to vector<16x256xf32>
    %38 = arith.mulf %36, %37 : vector<16x256xf32>
    %c0_16 = arith.constant 0 : index
    %c0_17 = arith.constant 0 : index
    %39 = vector.load %arg6[%c0_16, %c0_17] : memref<1x256xf32, #tpu.memory_space<vmem>>, vector<1x256xf32>
    %cst_18 = arith.constant 0.000000e+00 : f32
    %40 = vector.broadcast %cst_18 : f32 to vector<1x256xf32>
    %41 = arith.cmpf one, %39, %40 : vector<1x256xf32>
    %c0_19 = arith.constant 0 : index
    %c0_20 = arith.constant 0 : index
    %42 = vector.load %arg7[%c0_19, %c0_20] : memref<1x256xf32, #tpu.memory_space<vmem>>, vector<1x256xf32>
    %cst_21 = arith.constant 0.000000e+00 : f32
    %43 = vector.broadcast %cst_21 : f32 to vector<1x256xf32>
    %44 = arith.cmpf one, %42, %43 : vector<1x256xf32>
    %c16_i32_22 = arith.constant 16 : i32
    %45 = arith.muli %arg1, %c16_i32_22 : i32
    %46 = vector.broadcast %45 : i32 to vector<16x256xi32>
    %47 = arith.addi %11, %46 : vector<16x256xi32>
    %c1_i32_23 = arith.constant 1 : i32
    %48 = vector.broadcast %c1_i32_23 : i32 to vector<16x256xi32>
    %49 = arith.cmpi sge, %47, %48 : vector<16x256xi32>
    %c14_i32 = arith.constant 14 : i32
    %50 = vector.broadcast %c14_i32 : i32 to vector<16x256xi32>
    %51 = arith.cmpi sle, %47, %50 : vector<16x256xi32>
    %52 = arith.andi %49, %51 : vector<16x256xi1>
    %cst_24 = arith.constant 0.000000e+00 : f32
    %53 = vector.shape_cast %41 : vector<1x256xi1> to vector<1x256xi1>
    %54 = vector.broadcast %53 : vector<1x256xi1> to vector<16x256xi1>
    %55 = vector.broadcast %cst_24 : f32 to vector<16x256xf32>
    %56 = arith.select %54, %38, %55 : vector<16x256xi1>, vector<16x256xf32>
    %57 = vector.broadcast %44 : vector<1x256xi1> to vector<16x256xi1>
    %58 = arith.andi %57, %52 : vector<16x256xi1>
    %59 = arith.addf %56, %3 : vector<16x256xf32>
    %cst_25 = arith.constant 0.000000e+00 : f32
    %60 = vector.broadcast %cst_25 : f32 to vector<16x256xf32>
    %61 = arith.select %58, %59, %60 : vector<16x256xi1>, vector<16x256xf32>
    %62 = arith.mulf %61, %61 : vector<16x256xf32>
    %cst_26 = arith.constant dense<0.000000e+00> : vector<256xf32>
    %63 = vector.multi_reduction <add>, %62, %cst_26 [0] : vector<16x256xf32> to vector<256xf32>
    %64 = vector.shape_cast %63 : vector<256xf32> to vector<1x256xf32>
    %65 = vector.shape_cast %64 : vector<1x256xf32> to vector<1x1x1x256xf32>
    %c0_27 = arith.constant 0 : index
    %c0_28 = arith.constant 0 : index
    %c0_29 = arith.constant 0 : index
    %c0_30 = arith.constant 0 : index
    %66 = vector.load %arg8[%c0_27, %c0_28, %c0_29, %c0_30] : memref<1x1x1x256xf32, #tpu.memory_space<vmem>>, vector<1x1x1x256xf32>
    tpu.vector_store %arg8[%c0_27, %c0_28, %c0_29, %c0_30], %65 {strides = array<i32>} : memref<1x1x1x256xf32, #tpu.memory_space<vmem>>, vector<1x1x1x256xf32>,
    return
  }
  func.func @transform_0(%arg0: i32, %arg1: i32) -> (i32, i32, i32) {
    %c0_i32 = arith.constant 0 : i32
    %c0_i32_0 = arith.constant 0 : i32
    return %arg0, %arg1, %c0_i32 : i32, i32, i32
  }
  func.func @transform_1(%arg0: i32, %arg1: i32) -> (i32, i32, i32, i32) {
    %c16_i32 = arith.constant 16 : i32
    %0 = arith.muli %arg1, %c16_i32 : i32
    %c1_i32 = arith.constant 1 : i32
    %1 = arith.subi %0, %c1_i32 : i32
    %c0_i32 = arith.constant 0 : i32
    %2 = arith.maxsi %1, %c0_i32 : i32
    %c0_i32_0 = arith.constant 0 : i32
    %c0_i32_1 = arith.constant 0 : i32
    %c0_i32_2 = arith.constant 0 : i32
    return %arg0, %2, %c0_i32_0, %c0_i32_1 : i32, i32, i32, i32
  }
  func.func @transform_2(%arg0: i32, %arg1: i32) -> (i32, i32, i32, i32) {
    %c1_i32 = arith.constant 1 : i32
    %0 = arith.addi %arg1, %c1_i32 : i32
    %c16_i32 = arith.constant 16 : i32
    %1 = arith.muli %0, %c16_i32 : i32
    %c15_i32 = arith.constant 15 : i32
    %2 = arith.minsi %1, %c15_i32 : i32
    %c0_i32 = arith.constant 0 : i32
    %c0_i32_0 = arith.constant 0 : i32
    %c0_i32_1 = arith.constant 0 : i32
    return %arg0, %2, %c0_i32, %c0_i32_0 : i32, i32, i32, i32
  }
  func.func @transform_3(%arg0: i32, %arg1: i32) -> (i32, i32, i32) {
    %c0_i32 = arith.constant 0 : i32
    %c0_i32_0 = arith.constant 0 : i32
    return %arg0, %arg1, %c0_i32 : i32, i32, i32
  }
  func.func @transform_4(%arg0: i32, %arg1: i32) -> (i32, i32) {
    %c0_i32 = arith.constant 0 : i32
    %c0_i32_0 = arith.constant 0 : i32
    %c0_i32_1 = arith.constant 0 : i32
    return %c0_i32, %c0_i32_0 : i32, i32
  }
  func.func @transform_5(%arg0: i32, %arg1: i32) -> (i32, i32) {
    %c0_i32 = arith.constant 0 : i32
    %c0_i32_0 = arith.constant 0 : i32
    %c0_i32_1 = arith.constant 0 : i32
    return %c0_i32, %c0_i32_0 : i32, i32
  }
  func.func @transform_6(%arg0: i32, %arg1: i32) -> (i32, i32, i32, i32) {
    %c0_i32 = arith.constant 0 : i32
    %c0_i32_0 = arith.constant 0 : i32
    %c0_i32_1 = arith.constant 0 : i32
    return %arg0, %arg1, %c0_i32, %c0_i32_0 : i32, i32, i32, i32
  }
}

</mosaic_0001>

<llo_original>
// kernel: tpu_custom_call.1
$region0: #{tpu_custom_call.1}
  #allocation0 [shape = 'u32[]', space=smem, size = 0x4, offset = 0x4, fixed_abs, tag = 'smem constant byte address 0x4 - core index']
  #allocation1 [shape = 'u32[144,128]{1,0:T(1,128)}', space=vmem, size = 0x12000, scoped, tag = 'internal scratch']
  %s0 = inlined_call_operand.hbm [shape: f32[2,16,256], index: 0, kind: input, shape index: {}]
  %s1 = inlined_call_operand.hbm [shape: f32[2,16,1,256], index: 1, kind: input, shape index: {}]
  %s2 = inlined_call_operand.hbm [shape: f32[2,16,1,256], index: 2, kind: input, shape index: {}]
  %s3 = inlined_call_operand.hbm [shape: f32[2,16,256], index: 3, kind: input, shape index: {}]
  %s4 = inlined_call_operand.vmem [shape: f32[1,256], index: 4, kind: input, shape index: {}]
  %s5 = inlined_call_operand.vmem [shape: f32[1,256], index: 5, kind: input, shape index: {}]
  %s6 = inlined_call_operand.hbm [shape: f32[2,1,1,256], index: 6, kind: output, shape index: {}]
  %s7 = sld [smem:[#allocation0]]
  $region73: #{tpu_custom_call.1} parent=0
    _
  %s9 = ssub.s32 1, %s7
  %s10 = scalar_select 0, %s9, %s7
  $region1: #{tpu_custom_call.1} parent=0
    #allocation2 [shape = 'u8[32768]{0}', space=vmem, size = 0x8000, scoped, tag = 'input window, operand 0']
    #allocation3 [shape = 's32[2]{0}', space=sflag, size = 0x8, scoped, tag = 'scoped memory for tpu_custom_call.1']
    #allocation4 [shape = 's32[2]{0}', space=sflag, size = 0x8, scoped, tag = 'scoped memory for tpu_custom_call.1']
    #allocation5 [shape = 'u8[2048]{0}', space=vmem, size = 0x800, scoped, tag = 'input window, operand 1']
    #allocation6 [shape = 's32[2]{0}', space=sflag, size = 0x8, scoped, tag = 'scoped memory for tpu_custom_call.1']
    #allocation7 [shape = 'u8[2048]{0}', space=vmem, size = 0x800, scoped, tag = 'input window, operand 2']
    #allocation8 [shape = 'u8[32768]{0}', space=vmem, size = 0x8000, scoped, tag = 'input window, operand 3']
    #allocation9 [shape = 's32[2]{0}', space=sflag, size = 0x8, scoped, tag = 'scoped memory for tpu_custom_call.1']
    #allocation10 [shape = 'u8[2048]{0}', space=vmem, size = 0x800, scoped, tag = 'output window, operand 0']
    %11 = vsyncpa [#allocation3], 0
    %s12 = scalar_lea.sflag [#allocation3], 1
    %13 = vsyncpa %s12, 0
    %14 = vsyncpa [#allocation6], 0
    %s15 = scalar_lea.sflag [#allocation6], 1
    %16 = vsyncpa %s15, 0
    %17 = vsyncpa [#allocation9], 0
    %s18 = scalar_lea.sflag [#allocation9], 1
    %19 = vsyncpa %s18, 0
    %20 = vsyncpa [#allocation4], 0
    %s21 = scalar_lea.sflag [#allocation4], 1
    %22 = vsyncpa %s21, 0
    loop: start=0, step=1, limit=4
    $region2: #{tpu_custom_call.1} parent=1 // loop_pre_header
      _
    $region3: #{tpu_custom_call.1} parent=1 // loop_header
      %s24 = sphi 0, %s28
      %p25 = scmp.ge.s32.totalorder %s24, 4
      %s31 = sphi 0, %s43
      %s32 = sphi 0, %s39
      %s33 = sphi 0, %s31
      %s34 = sphi 0, %s32
      %s35 = sphi 0, %s33
      %s36 = sphi 0, %s34
      %s48 = sphi 0, %s50
      %s51 = sphi 0, %s48
      %s52 = sphi 0, %s51
      %s68 = sphi 0, %s52
      %s84 = sphi 0, %s86
      %s87 = sphi 0, %s84
      %s88 = sphi 0, %s87
      %s104 = sphi 0, %s88
      %s120 = sphi 0, %s122
      %s123 = sphi 0, %s120
      %s124 = sphi 0, %s123
      %s140 = sphi 0, %s124
      %s148 = sphi 0, %s150
      %s151 = sphi 0, %s148
      %s152 = sphi 0, %s151
      %s168 = sphi 0, %s152
      %s172 = sphi 0, %s172
      %s174 = sphi 0, %s172
      %s175 = sphi 0, %s174
      %s189 = sphi 0, %s175
      %s193 = sphi 0, %s193
      %s195 = sphi 0, %s193
      %s196 = sphi 0, %s195
      %s210 = sphi 0, %s196
      %s218 = sphi 0, %s220
      %s221 = sphi 0, %s218
      %s222 = sphi 0, %s221
      %s238 = sphi 0, %s222
    $region4: #{tpu_custom_call.1} parent=1 // loop_header_branch
      %27 = sbr.rel (%p25) target = $region8
    $region5: #{tpu_custom_call.1} parent=1 // loop_body
      %s29 = ssub.s32 %s24, 1
      %s30 = ssub.s32 %s24, 2
      %s37 = sadd.s32 1, %s32
      %p38 = scmp.ge.s32.totalorder %s37, 1
      %s39 = scalar_select %p38, 0, %s37
      %s40 = sadd.s32 1, %s31
      %s41 = scalar_select %p38, %s40, %s31
      %p42 = scmp.ge.s32.totalorder %s41, 2
      %s43 = scalar_select %p42, 0, %s41
      %s44 = ssub.s32 %s31, %s43
      %s45 = ssub.s32 %s32, %s39
      %s46 = sor.u32 %s44, %s45
      %p47 = scmp.eq.s32.totalorder %s46, 0
      %s49 = sadd.s32 %s48, 1
      %s50 = scalar_select %p47, %s48, %s49
      %p53 = pneg %p47
      %p54 = scmp.eq.s32.totalorder %s24, 1
      %p55 = por %p53, %p54
      %p56 = scmp.ne.s32.totalorder %s48, %s51
      %p57 = scmp.eq.s32.totalorder %s24, 0
      %p58 = por %p56, %p57
      %p59 = scmp.ne.s32.totalorder %s48, %s51
      %p60 = scmp.eq.s32.totalorder %s29, 1
      %p61 = por %p59, %p60
      %p62 = scmp.ne.s32.totalorder %s51, %s52
      %p63 = scmp.eq.s32.totalorder %s29, 0
      %p64 = por %p62, %p63
      %p65 = scmp.ne.s32.totalorder %s51, %s52
      %p66 = scmp.eq.s32.totalorder %s30, 1
      %p67 = por %p65, %p66
      %p69 = scmp.ne.s32.totalorder %s52, %s68
      %p70 = scmp.eq.s32.totalorder %s30, 0
      %p71 = por %p69, %p70
      %s72 = smul.u32 %s32, 16
      %s73 = ssub.s32 %s72, 1
      %p74 = scmp.gt.s32.totalorder %s73, 0
      %s75 = scalar_select %p74, %s73, 0
      %s76 = smul.u32 %s39, 16
      %s77 = ssub.s32 %s76, 1
      %p78 = scmp.gt.s32.totalorder %s77, 0
      %s79 = scalar_select %p78, %s77, 0
      %s80 = ssub.s32 %s31, %s43
      %s81 = ssub.s32 %s75, %s79
      %s82 = sor.u32 %s80, %s81
      %p83 = scmp.eq.s32.totalorder %s82, 0
      %s85 = sadd.s32 %s84, 1
      %s86 = scalar_select %p83, %s84, %s85
      %p89 = pneg %p83
      %p90 = scmp.eq.s32.totalorder %s24, 1
      %p91 = por %p89, %p90
      %p92 = scmp.ne.s32.totalorder %s84, %s87
      %p93 = scmp.eq.s32.totalorder %s24, 0
      %p94 = por %p92, %p93
      %p95 = scmp.ne.s32.totalorder %s84, %s87
      %p96 = scmp.eq.s32.totalorder %s29, 1
      %p97 = por %p95, %p96
      %p98 = scmp.ne.s32.totalorder %s87, %s88
      %p99 = scmp.eq.s32.totalorder %s29, 0
      %p100 = por %p98, %p99
      %p101 = scmp.ne.s32.totalorder %s87, %s88
      %p102 = scmp.eq.s32.totalorder %s30, 1
      %p103 = por %p101, %p102
      %p105 = scmp.ne.s32.totalorder %s88, %s104
      %p106 = scmp.eq.s32.totalorder %s30, 0
      %p107 = por %p105, %p106
      %s108 = sadd.s32 %s32, 1
      %s109 = smul.u32 %s108, 16
      %p110 = scmp.lt.s32.totalorder %s109, 15
      %s111 = scalar_select %p110, %s109, 15
      %s112 = sadd.s32 %s39, 1
      %s113 = smul.u32 %s112, 16
      %p114 = scmp.lt.s32.totalorder %s113, 15
      %s115 = scalar_select %p114, %s113, 15
      %s116 = ssub.s32 %s31, %s43
      %s117 = ssub.s32 %s111, %s115
      %s118 = sor.u32 %s116, %s117
      %p119 = scmp.eq.s32.totalorder %s118, 0
      %s121 = sadd.s32 %s120, 1
      %s122 = scalar_select %p119, %s120, %s121
      %p125 = pneg %p119
      %p126 = scmp.eq.s32.totalorder %s24, 1
      %p127 = por %p125, %p126
      %p128 = scmp.ne.s32.totalorder %s120, %s123
      %p129 = scmp.eq.s32.totalorder %s24, 0
      %p130 = por %p128, %p129
      %p131 = scmp.ne.s32.totalorder %s120, %s123
      %p132 = scmp.eq.s32.totalorder %s29, 1
      %p133 = por %p131, %p132
      %p134 = scmp.ne.s32.totalorder %s123, %s124
      %p135 = scmp.eq.s32.totalorder %s29, 0
      %p136 = por %p134, %p135
      %p137 = scmp.ne.s32.totalorder %s123, %s124
      %p138 = scmp.eq.s32.totalorder %s30, 1
      %p139 = por %p137, %p138
      %p141 = scmp.ne.s32.totalorder %s124, %s140
      %p142 = scmp.eq.s32.totalorder %s30, 0
      %p143 = por %p141, %p142
      %s144 = ssub.s32 %s31, %s43
      %s145 = ssub.s32 %s32, %s39
      %s146 = sor.u32 %s144, %s145
      %p147 = scmp.eq.s32.totalorder %s146, 0
      %s149 = sadd.s32 %s148, 1
      %s150 = scalar_select %p147, %s148, %s149
      %p153 = pneg %p147
      %p154 = scmp.eq.s32.totalorder %s24, 1
      %p155 = por %p153, %p154
      %p156 = scmp.ne.s32.totalorder %s148, %s151
      %p157 = scmp.eq.s32.totalorder %s24, 0
      %p158 = por %p156, %p157
      %p159 = scmp.ne.s32.totalorder %s148, %s151
      %p160 = scmp.eq.s32.totalorder %s29, 1
      %p161 = por %p159, %p160
      %p162 = scmp.ne.s32.totalorder %s151, %s152
      %p163 = scmp.eq.s32.totalorder %s29, 0
      %p164 = por %p162, %p163
      %p165 = scmp.ne.s32.totalorder %s151, %s152
      %p166 = scmp.eq.s32.totalorder %s30, 1
      %p167 = por %p165, %p166
      %p169 = scmp.ne.s32.totalorder %s152, %s168
      %p170 = scmp.eq.s32.totalorder %s30, 0
      %p171 = por %p169, %p170
      %s173 = sadd.s32 %s172, 1
      %p176 = scmp.eq.s32.totalorder %s24, 1
      %p177 = scmp.ne.s32.totalorder %s172, %s174
      %p178 = scmp.eq.s32.totalorder %s24, 0
      %p179 = por %p177, %p178
      %p180 = scmp.ne.s32.totalorder %s172, %s174
      %p181 = scmp.eq.s32.totalorder %s29, 1
      %p182 = por %p180, %p181
      %p183 = scmp.ne.s32.totalorder %s174, %s175
      %p184 = scmp.eq.s32.totalorder %s29, 0
      %p185 = por %p183, %p184
      %p186 = scmp.ne.s32.totalorder %s174, %s175
      %p187 = scmp.eq.s32.totalorder %s30, 1
      %p188 = por %p186, %p187
      %p190 = scmp.ne.s32.totalorder %s175, %s189
      %p191 = scmp.eq.s32.totalorder %s30, 0
      %p192 = por %p190, %p191
      %s194 = sadd.s32 %s193, 1
      %p197 = scmp.eq.s32.totalorder %s24, 1
      %p198 = scmp.ne.s32.totalorder %s193, %s195
      %p199 = scmp.eq.s32.totalorder %s24, 0
      %p200 = por %p198, %p199
      %p201 = scmp.ne.s32.totalorder %s193, %s195
      %p202 = scmp.eq.s32.totalorder %s29, 1
      %p203 = por %p201, %p202
      %p204 = scmp.ne.s32.totalorder %s195, %s196
      %p205 = scmp.eq.s32.totalorder %s29, 0
      %p206 = por %p204, %p205
      %p207 = scmp.ne.s32.totalorder %s195, %s196
      %p208 = scmp.eq.s32.totalorder %s30, 1
      %p209 = por %p207, %p208
      %p211 = scmp.ne.s32.totalorder %s196, %s210
      %p212 = scmp.eq.s32.totalorder %s30, 0
      %p213 = por %p211, %p212
      %s214 = ssub.s32 %s31, %s43
      %s215 = ssub.s32 %s32, %s39
      %s216 = sor.u32 %s214, %s215
      %p217 = scmp.eq.s32.totalorder %s216, 0
      %s219 = sadd.s32 %s218, 1
      %s220 = scalar_select %p217, %s218, %s219
      %p223 = pneg %p217
      %p224 = scmp.eq.s32.totalorder %s24, 1
      %p225 = por %p223, %p224
      %p226 = scmp.ne.s32.totalorder %s218, %s221
      %p227 = scmp.eq.s32.totalorder %s24, 0
      %p228 = por %p226, %p227
      %p229 = scmp.ne.s32.totalorder %s218, %s221
      %p230 = scmp.eq.s32.totalorder %s29, 1
      %p231 = por %p229, %p230
      %p232 = scmp.ne.s32.totalorder %s221, %s222
      %p233 = scmp.eq.s32.totalorder %s29, 0
      %p234 = por %p232, %p233
      %p235 = scmp.ne.s32.totalorder %s221, %s222
      %p236 = scmp.eq.s32.totalorder %s30, 1
      %p237 = por %p235, %p236
      %p239 = scmp.ne.s32.totalorder %s222, %s238
      %p240 = scmp.eq.s32.totalorder %s30, 0
      %p241 = por %p239, %p240
      %p242 = scmp.le.s32.totalorder 1, %s24
      %p243 = scmp.lt.s32.totalorder %s24, 3
      %p244 = pnand %p242, %p243
      %p245 = pneg %p244
      // Predicated region
      $region9: #{tpu_custom_call.1} parent=5 // pred_check
        _
      $region10: #{tpu_custom_call.1} parent=5 // pred_check_branch
        %247 = sbr.rel (%p244) target = $region12
      $region11: #{tpu_custom_call.1} parent=5 // pred_region
        %s248 = ssub.s32 %s24, 1
        // Predicated region
        $region13: #{tpu_custom_call.1} parent=11 // pred_check
          %p249 = pneg %p185
        $region14: #{tpu_custom_call.1} parent=11 // pred_check_branch
          %251 = sbr.rel (%p249) target = $region16
        $region15: #{tpu_custom_call.1} parent=11 // pred_region
          _
        $region16: #{tpu_custom_call.1} parent=11 // pred_fallthru
          _
        // Predicated region
        $region17: #{tpu_custom_call.1} parent=11 // pred_check
          %p252 = pneg %p206
        $region18: #{tpu_custom_call.1} parent=11 // pred_check_branch
          %254 = sbr.rel (%p252) target = $region20
        $region19: #{tpu_custom_call.1} parent=11 // pred_region
          _
        $region20: #{tpu_custom_call.1} parent=11 // pred_fallthru
          _
      $region12: #{tpu_custom_call.1} parent=5 // pred_fallthru
        _
      %p255 = scmp.lt.s32.totalorder %s24, 2
      // Predicated region
      $region21: #{tpu_custom_call.1} parent=5 // pred_check
        %p256 = pneg %p255
      $region22: #{tpu_custom_call.1} parent=5 // pred_check_branch
        %258 = sbr.rel (%p256) target = $region24
      $region23: #{tpu_custom_call.1} parent=5 // pred_region
        // Predicated region
        $region25: #{tpu_custom_call.1} parent=23 // pred_check
          %p259 = pneg %p58
        $region26: #{tpu_custom_call.1} parent=23 // pred_check_branch
          %261 = sbr.rel (%p259) target = $region28
        $region27: #{tpu_custom_call.1} parent=23 // pred_region
          %s262 = sand.u32 %s48, 1
          %s263 = scalar_lea.sflag [#allocation3], %s262
          %s264 = sand.u32 %s48, 1
          %s265 = smul.addr %s264, 32
          %s266 = scalar_lea.vmem [#allocation2], %s265
          %s267 = smul.u32 2, %s32
          %s269 = ssub.s32 512, 512
          %270 = vsyncadd %s263, %s269
          %s271 = smul.addr %s267, 2
          %s272 = smul.addr %s31, 4
          %s273 = sadd.s32 %s271, %s272
          %s274 = smul.addr %s273, 128
          %s275 = scalar_lea.hbm %s0, %s274
          %s276 = sshll.u32 %s266, 4
          %s277 = int_to_ptr.vmem [resolvable:$true] %s276
          %282 = dma.hbm_to_vmem [thread:$0]  %s275, 512, %s277, %s263, 256, 256, 16
        $region28: #{tpu_custom_call.1} parent=23 // pred_fallthru
          _
        // Predicated region
        $region29: #{tpu_custom_call.1} parent=23 // pred_check
          %p283 = pneg %p94
        $region30: #{tpu_custom_call.1} parent=23 // pred_check_branch
          %285 = sbr.rel (%p283) target = $region32
        $region31: #{tpu_custom_call.1} parent=23 // pred_region
          %s286 = sand.u32 %s24, 1
          %s287 = scalar_lea.sflag [#allocation6], %s286
          %s288 = sand.u32 %s84, 1
          %s289 = smul.addr %s288, 2
          %s290 = scalar_lea.vmem [#allocation5], %s289
          %s291 = smul.u32 %s32, 16
          %s292 = ssub.s32 %s291, 1
          %p293 = scmp.gt.s32.totalorder %s292, 0
          %s294 = scalar_select %p293, %s292, 0
          %s296 = ssub.s32 32, 32
          %297 = vsyncadd %s287, %s296
          %s298 = smul.addr %s294, 2
          %s299 = smul.addr %s31, 32
          %s300 = sadd.s32 %s298, %s299
          %s301 = smul.addr %s300, 16
          %s302 = scalar_lea.hbm %s1, %s301
          %s304 = sshll.u32 %s290, 4
          %s305 = int_to_ptr.vmem [resolvable:$true] %s304
          %307 = dma.hbm_to_vmem [thread:$0]  %s302, 32, %s305, %s287
        $region32: #{tpu_custom_call.1} parent=23 // pred_fallthru
          _
        // Predicated region
        $region33: #{tpu_custom_call.1} parent=23 // pred_check
          %p308 = pneg %p130
        $region34: #{tpu_custom_call.1} parent=23 // pred_check_branch
          %310 = sbr.rel (%p308) target = $region36
        $region35: #{tpu_custom_call.1} parent=23 // pred_region
          %s311 = sand.u32 %s24, 1
          %s312 = scalar_lea.sflag [#allocation6], %s311
          %s313 = sand.u32 %s120, 1
          %s314 = smul.addr %s313, 2
          %s315 = scalar_lea.vmem [#allocation7], %s314
          %s316 = sadd.s32 %s32, 1
          %s317 = smul.u32 %s316, 16
          %p318 = scmp.lt.s32.totalorder %s317, 15
          %s319 = scalar_select %p318, %s317, 15
          %s321 = ssub.s32 32, 32
          %322 = vsyncadd %s312, %s321
          %s323 = smul.addr %s319, 2
          %s324 = smul.addr %s31, 32
          %s325 = sadd.s32 %s323, %s324
          %s326 = smul.addr %s325, 16
          %s327 = scalar_lea.hbm %s2, %s326
          %s329 = sshll.u32 %s315, 4
          %s330 = int_to_ptr.vmem [resolvable:$true] %s329
          %332 = dma.hbm_to_vmem [thread:$0]  %s327, 32, %s330, %s312
        $region36: #{tpu_custom_call.1} parent=23 // pred_fallthru
          _
        // Predicated region
        $region37: #{tpu_custom_call.1} parent=23 // pred_check
          %p333 = pneg %p158
        $region38: #{tpu_custom_call.1} parent=23 // pred_check_branch
          %335 = sbr.rel (%p333) target = $region40
        $region39: #{tpu_custom_call.1} parent=23 // pred_region
          %s336 = sand.u32 %s148, 1
          %s337 = scalar_lea.sflag [#allocation9], %s336
          %s338 = sand.u32 %s148, 1
          %s339 = smul.addr %s338, 32
          %s340 = scalar_lea.vmem [#allocation8], %s339
          %s341 = smul.u32 2, %s32
          %s343 = ssub.s32 512, 512
          %344 = vsyncadd %s337, %s343
          %s345 = smul.addr %s341, 2
          %s346 = smul.addr %s31, 4
          %s347 = sadd.s32 %s345, %s346
          %s348 = smul.addr %s347, 128
          %s349 = scalar_lea.hbm %s3, %s348
          %s350 = sshll.u32 %s340, 4
          %s351 = int_to_ptr.vmem [resolvable:$true] %s350
          %356 = dma.hbm_to_vmem [thread:$0]  %s349, 512, %s351, %s337, 256, 256, 16
        $region40: #{tpu_custom_call.1} parent=23 // pred_fallthru
          _
      $region24: #{tpu_custom_call.1} parent=5 // pred_fallthru
        _
      %p357 = scmp.le.s32.totalorder 1, %s24
      %p358 = scmp.lt.s32.totalorder %s24, 3
      %p359 = pnand %p357, %p358
      %p360 = pneg %p359
      // Predicated region
      $region41: #{tpu_custom_call.1} parent=5 // pred_check
        _
      $region42: #{tpu_custom_call.1} parent=5 // pred_check_branch
        %362 = sbr.rel (%p359) target = $region44
      $region43: #{tpu_custom_call.1} parent=5 // pred_region
        %s363 = ssub.s32 %s24, 1
        %s364 = sand.u32 %s51, 1
        %s365 = scalar_lea.sflag [#allocation3], %s364
        %s366 = sand.u32 %s51, 1
        %s367 = smul.addr %s366, 32
        %s368 = scalar_lea.vmem [#allocation2], %s367
        // Predicated region
        $region45: #{tpu_custom_call.1} parent=43 // pred_check
          %p369 = pneg %p64
        $region46: #{tpu_custom_call.1} parent=43 // pred_check_branch
          %371 = sbr.rel (%p369) target = $region48
        $region47: #{tpu_custom_call.1} parent=43 // pred_region
          %372 = dma.done %s365, 512
        $region48: #{tpu_custom_call.1} parent=43 // pred_fallthru
          _
        %s373 = sand.u32 %s29, 1
        %s374 = scalar_lea.sflag [#allocation6], %s373
        %s375 = sand.u32 %s87, 1
        %s376 = smul.addr %s375, 2
        %s377 = scalar_lea.vmem [#allocation5], %s376
        // Predicated region
        $region49: #{tpu_custom_call.1} parent=43 // pred_check
          %p378 = pneg %p100
        $region50: #{tpu_custom_call.1} parent=43 // pred_check_branch
          %380 = sbr.rel (%p378) target = $region52
        $region51: #{tpu_custom_call.1} parent=43 // pred_region
          %381 = dma.done %s374, 32
        $region52: #{tpu_custom_call.1} parent=43 // pred_fallthru
          _
        %s382 = sand.u32 %s29, 1
        %s383 = scalar_lea.sflag [#allocation6], %s382
        %s384 = sand.u32 %s123, 1
        %s385 = smul.addr %s384, 2
        %s386 = scalar_lea.vmem [#allocation7], %s385
        // Predicated region
        $region53: #{tpu_custom_call.1} parent=43 // pred_check
          %p387 = pneg %p136
        $region54: #{tpu_custom_call.1} parent=43 // pred_check_branch
          %389 = sbr.rel (%p387) target = $region56
        $region55: #{tpu_custom_call.1} parent=43 // pred_region
          %390 = dma.done %s383, 32
        $region56: #{tpu_custom_call.1} parent=43 // pred_fallthru
          _
        %s391 = sand.u32 %s151, 1
        %s392 = scalar_lea.sflag [#allocation9], %s391
        %s393 = sand.u32 %s151, 1
        %s394 = smul.addr %s393, 32
        %s395 = scalar_lea.vmem [#allocation8], %s394
        // Predicated region
        $region57: #{tpu_custom_call.1} parent=43 // pred_check
          %p396 = pneg %p164
        $region58: #{tpu_custom_call.1} parent=43 // pred_check_branch
          %398 = sbr.rel (%p396) target = $region60
        $region59: #{tpu_custom_call.1} parent=43 // pred_region
          %399 = dma.done %s392, 512
        $region60: #{tpu_custom_call.1} parent=43 // pred_fallthru
          _
        %s400 = sand.u32 %s51, 1
        %s401 = scalar_lea.sflag [#allocation3], %s400
        %s402 = sand.u32 %s51, 1
        %s403 = smul.addr %s402, 32
        %s404 = scalar_lea.vmem [#allocation2], %s403
        %p405 = pneg %p64
        %p406 = pneg %p61
        %s407 = sand.u32 %s29, 1
        %s408 = scalar_lea.sflag [#allocation6], %s407
        %s409 = sand.u32 %s87, 1
        %s410 = smul.addr %s409, 2
        %s411 = scalar_lea.vmem [#allocation5], %s410
        %p412 = pneg %p100
        %p413 = pneg %p97
        %s414 = sand.u32 %s29, 1
        %s415 = scalar_lea.sflag [#allocation6], %s414
        %s416 = sand.u32 %s123, 1
        %s417 = smul.addr %s416, 2
        %s418 = scalar_lea.vmem [#allocation7], %s417
        %p419 = pneg %p136
        %p420 = pneg %p133
        %s421 = sand.u32 %s151, 1
        %s422 = scalar_lea.sflag [#allocation9], %s421
        %s423 = sand.u32 %s151, 1
        %s424 = smul.addr %s423, 32
        %s425 = scalar_lea.vmem [#allocation8], %s424
        %p426 = pneg %p164
        %p427 = pneg %p161
        %p428 = pneg %p185
        %p429 = pneg %p182
        %p430 = pneg %p206
        %p431 = pneg %p203
        %p432 = pneg %p234
        %p433 = pneg %p231
        %s434 = sand.u32 %s221, 1
        %s435 = scalar_lea.sflag [#allocation4], %s434
        %s436 = sand.u32 %s221, 1
        %s437 = smul.addr %s436, 2
        %s438 = scalar_lea.vmem [#allocation10], %s437
        %s439 = smul.u32 2, %s34
        %s440 = smul.u32 %s34, 16
        %s441 = ssub.s32 %s440, 1
        %p442 = scmp.gt.s32.totalorder %s441, 0
        %s443 = scalar_select %p442, %s441, 0
        %s444 = sadd.s32 %s34, 1
        %s445 = smul.u32 %s444, 16
        %p446 = scmp.lt.s32.totalorder %s445, 15
        %s447 = scalar_select %p446, %s445, 15
        %s448 = smul.u32 2, %s34
        %v449 = vld [vmem:[%s368] sm:$0xff]
        %v450 = vld [vmem:[%s368 + $0x8] sm:$0xff]
        %v451 = vld [vmem:[%s368 + $0x10] sm:$0xff]
        %v452 = vld [vmem:[%s368 + $0x18] sm:$0xff]
        %v453 = vld [vmem:[%s395] sm:$0xff]
        %v454 = vld [vmem:[%s395 + $0x8] sm:$0xff]
        %v455 = vld [vmem:[%s395 + $0x10] sm:$0xff]
        %v456 = vld [vmem:[%s395 + $0x18] sm:$0xff]
        %v457 = vld [vmem:[%s377] sm:$0x3]
        %v458 = vld [vmem:[%s386] sm:$0x3]
        %v459 = vrot.slane %v449, 7
        %v460 = vrot.slane %v450, 7
        %v461 = vrot.slane %v451, 7
        %v462 = vrot.slane %v452, 7
        %v463 = vlaneseq
        %v464 = vshrl.u32 %v463, 7
        %vm465 = vcmp.lt.s32.totalorder %v464, 1
        %v466 = vsel %vm465, %v459, %v461
        %v467 = vsel %vm465, %v460, %v462
        %v468 = vsel %vm465, %v461, %v459
        %v469 = vsel %vm465, %v462, %v460
        %v470 = vrot.slane %v449, 1
        %v471 = vrot.slane %v450, 1
        %v472 = vrot.slane %v451, 1
        %v473 = vrot.slane %v452, 1
        %vm474 = vcmp.lt.s32.totalorder %v464, 7
        %v475 = vsel %vm474, %v470, %v472
        %v476 = vsel %vm474, %v471, %v473
        %v477 = vsel %vm474, %v472, %v470
        %v478 = vsel %vm474, %v473, %v471
        %v479 = vadd.f32 %v468, %v475
        %v480 = vadd.f32 %v469, %v476
        %v481 = vadd.f32 %v466, %v477
        %v482 = vadd.f32 %v467, %v478
        %v483 = vadd.s32 %v464, 8
        %vm484 = vcmp.eq.s32.totalorder %v464, 0
        %vm485 = vcmp.eq.s32.totalorder %v483, 0
        %v488 = vcombine.low %v449, %v450
        %v490 = vunpack.c.l.s4 1966171168
        %v491 = vunpack.c.0.s8 %v490
        %v492 = vlaneseq
        %v493 = vshrl.u32 %v492, 7
        %v494 = vsub.s32 %v491, %v493
        %v495 = vrot.slane %v488, %v494
        %v496 = vcombine.high %v495, %v495
        %v498 = vunpack.c.l.s4 1966171168
        %v499 = vunpack.c.0.s8 %v498
        %v500 = vlaneseq
        %v501 = vshrl.u32 %v500, 7
        %v502 = vsub.s32 %v499, %v501
        %v503 = vrot.slane %v496, %v502
        %v505 = vadd.f32 %v457, %v503
        %v507 = vlaneseq
        %v508 = vshrl.u32 %v507, 7
        %v509 = vsub.s32 0, %v508
        %v510 = vrot.slane %v505, %v509
        %v511 = vlaneseq
        %v512 = vshrl.u32 %v511, 7
        %v513 = vsub.s32 1, %v512
        %v514 = vrot.slane %v505, %v513
        %v517 = vsel %vm484, %v510, %v479
        %v518 = vsel %vm484, %v514, %v480
        %v519 = vsel %vm485, %v510, %v481
        %v520 = vsel %vm485, %v514, %v482
        %vm521 = vcmp.eq.s32.totalorder %v464, 15
        %vm522 = vcmp.eq.s32.totalorder %v483, 15
        %v524 = vlaneseq
        %v525 = vshrl.u32 %v524, 7
        %v526 = vsub.s32 0, %v525
        %v527 = vrot.slane %v458, %v526
        %v528 = vlaneseq
        %v529 = vshrl.u32 %v528, 7
        %v530 = vsub.s32 1, %v529
        %v531 = vrot.slane %v458, %v530
        %v534 = vadd.f32 %v451, %v527
        %v535 = vadd.f32 %v452, %v531
        %v536 = vlaneseq
        %v537 = vshrl.u32 %v536, 7
        %v538 = vsub.s32 6, %v537
        %v539 = vrot.slane %v534, %v538
        %v540 = vlaneseq
        %v541 = vshrl.u32 %v540, 7
        %v542 = vsub.s32 6, %v541
        %v543 = vrot.slane %v535, %v542
        %v544 = vsel %vm521, %v539, %v517
        %v545 = vsel %vm521, %v543, %v518
        %v546 = vsel %vm522, %v539, %v519
        %v547 = vsel %vm522, %v543, %v520
        %548 = vrot.lane.b32.xlu0 %v449, 1
        %v549 = vpop.permute.xlu0 %548
        %550 = vrot.lane.b32.xlu0 %v451, 1
        %v551 = vpop.permute.xlu0 %550
        %552 = vrot.lane.b32.xlu0 %v450, 1
        %v553 = vpop.permute.xlu0 %552
        %554 = vrot.lane.b32.xlu0 %v452, 1
        %v555 = vpop.permute.xlu0 %554
        %v556 = vlaneseq
        %v557 = vand.u32 %v556, 127
        %vm558 = vcmp.lt.s32.totalorder %v557, 1
        %v559 = vsel %vm558, %v549, %v553
        %v560 = vsel %vm558, %v551, %v555
        %v561 = vsel %vm558, %v553, %v549
        %v562 = vsel %vm558, %v555, %v551
        %563 = vrot.lane.b32.xlu0 %v449, 127
        %v564 = vpop.permute.xlu0 %563
        %565 = vrot.lane.b32.xlu0 %v451, 127
        %v566 = vpop.permute.xlu0 %565
        %567 = vrot.lane.b32.xlu0 %v450, 127
        %v568 = vpop.permute.xlu0 %567
        %569 = vrot.lane.b32.xlu0 %v452, 127
        %v570 = vpop.permute.xlu0 %569
        %vm571 = vcmp.lt.s32.totalorder %v557, 127
        %v572 = vsel %vm571, %v564, %v568
        %v573 = vsel %vm571, %v566, %v570
        %v574 = vsel %vm571, %v568, %v564
        %v575 = vsel %vm571, %v570, %v566
        %v576 = vadd.f32 %v561, %v572
        %v577 = vadd.f32 %v559, %v574
        %v578 = vadd.f32 %v562, %v573
        %v579 = vadd.f32 %v560, %v575
        %580 = vrot.lane.b32.xlu0 %v449, 16
        %v581 = vpop.permute.xlu0 %580
        %582 = vrot.lane.b32.xlu0 %v451, 16
        %v583 = vpop.permute.xlu0 %582
        %584 = vrot.lane.b32.xlu0 %v450, 16
        %v585 = vpop.permute.xlu0 %584
        %586 = vrot.lane.b32.xlu0 %v452, 16
        %v587 = vpop.permute.xlu0 %586
        %vm588 = vcmp.lt.s32.totalorder %v557, 16
        %v589 = vsel %vm588, %v581, %v585
        %v590 = vsel %vm588, %v583, %v587
        %v591 = vsel %vm588, %v585, %v581
        %v592 = vsel %vm588, %v587, %v583
        %593 = vrot.lane.b32.xlu0 %v449, 112
        %v594 = vpop.permute.xlu0 %593
        %595 = vrot.lane.b32.xlu0 %v451, 112
        %v596 = vpop.permute.xlu0 %595
        %597 = vrot.lane.b32.xlu0 %v450, 112
        %v598 = vpop.permute.xlu0 %597
        %599 = vrot.lane.b32.xlu0 %v452, 112
        %v600 = vpop.permute.xlu0 %599
        %vm601 = vcmp.lt.s32.totalorder %v557, 112
        %v602 = vsel %vm601, %v594, %v598
        %v603 = vsel %vm601, %v596, %v600
        %v604 = vsel %vm601, %v598, %v594
        %v605 = vsel %vm601, %v600, %v596
        %v606 = vadd.f32 %v591, %v602
        %v607 = vadd.f32 %v589, %v604
        %v608 = vadd.f32 %v592, %v603
        %v609 = vadd.f32 %v590, %v605
        %v610 = vadd.f32 %v544, %v606
        %v611 = vadd.f32 %v545, %v607
        %v612 = vadd.f32 %v546, %v608
        %v613 = vadd.f32 %v547, %v609
        %v614 = vadd.f32 %v610, %v576
        %v615 = vadd.f32 %v611, %v577
        %v616 = vadd.f32 %v612, %v578
        %v617 = vadd.f32 %v613, %v579
        %v618 = vmul.f32 %v449, 6.0
        %v619 = vmul.f32 %v450, 6.0
        %v620 = vmul.f32 %v451, 6.0
        %v621 = vmul.f32 %v452, 6.0
        %v622 = vsub.f32 %v614, %v618
        %v623 = vsub.f32 %v615, %v619
        %v624 = vsub.f32 %v616, %v620
        %v625 = vsub.f32 %v617, %v621
        %v626 = vmul.f32 %v622, 128.0
        %v627 = vmul.f32 %v623, 128.0
        %v628 = vmul.f32 %v624, 128.0
        %v629 = vmul.f32 %v625, 128.0
        %v630 = vld [vmem:[%s4] sm:$0x3]
        %vm631 = vcmp.ne.f32.partialorder %v630, 0.0
        %v632 = vld [vmem:[%s5] sm:$0x3]
        %vm633 = vcmp.ne.f32.partialorder %v632, 0.0
        %s634 = smul.u32 %s34, 16
        %v635 = vstv %s634
        %v636 = vadd.s32 %v464, %v635
        %v637 = vadd.s32 %v483, %v635
        %vm638 = vcmp.ge.s32.totalorder %v636, 1
        %vm639 = vcmp.ge.s32.totalorder %v637, 1
        %vm640 = vcmp.le.s32.totalorder %v636, 14
        %vm641 = vcmp.le.s32.totalorder %v637, 14
        %vm642 = vmand %vm638, %vm640
        %vm643 = vmand %vm639, %vm641
        %v644 = vsel %vm631, 1, 0
        %v645 = vlaneseq
        %v646 = vshrl.u32 %v645, 7
        %v647 = vsub.s32 0, %v646
        %v648 = vrot.slane %v644, %v647
        %v649 = vlaneseq
        %v650 = vshrl.u32 %v649, 7
        %v651 = vsub.s32 1, %v650
        %v652 = vrot.slane %v644, %v651
        %vm653 = vcmp.eq.s32.totalorder %v648, 1
        %vm654 = vcmp.eq.s32.totalorder %v652, 1
        %v655 = vsel %vm653, %v626, 0.0
        %v656 = vsel %vm654, %v627, 0.0
        %v657 = vsel %vm653, %v628, 0.0
        %v658 = vsel %vm654, %v629, 0.0
        %v659 = vsel %vm633, 1, 0
        %v660 = vlaneseq
        %v661 = vshrl.u32 %v660, 7
        %v662 = vsub.s32 0, %v661
        %v663 = vrot.slane %v659, %v662
        %v664 = vlaneseq
        %v665 = vshrl.u32 %v664, 7
        %v666 = vsub.s32 1, %v665
        %v667 = vrot.slane %v659, %v666
        %vm668 = vcmp.eq.s32.totalorder %v663, 1
        %vm669 = vcmp.eq.s32.totalorder %v667, 1
        %vm670 = vmand %vm668, %vm642
        %vm671 = vmand %vm669, %vm642
        %vm672 = vmand %vm668, %vm643
        %vm673 = vmand %vm669, %vm643
        %v674 = vadd.f32 %v655, %v453
        %v675 = vadd.f32 %v656, %v454
        %v676 = vadd.f32 %v657, %v455
        %v677 = vadd.f32 %v658, %v456
        %v678 = vsel %vm670, %v674, 0.0
        %v679 = vsel %vm671, %v675, 0.0
        %v680 = vsel %vm672, %v676, 0.0
        %v681 = vsel %vm673, %v677, 0.0
        %v682 = vmul.f32 %v678, %v678
        %v683 = vmul.f32 %v679, %v679
        %v684 = vmul.f32 %v680, %v680
        %v685 = vmul.f32 %v681, %v681
        %v686 = vadd.f32 %v682, %v684
        %v687 = vrot.slane %v686, 4
        %v688 = vadd.f32 %v686, %v687
        %v689 = vrot.slane %v688, 2
        %v690 = vadd.f32 %v688, %v689
        %v691 = vrot.slane %v690, 1
        %v692 = vadd.f32 %v690, %v691
        %v693 = vadd.f32 %v683, %v685
        %v694 = vrot.slane %v693, 4
        %v695 = vadd.f32 %v693, %v694
        %v696 = vrot.slane %v695, 2
        %v697 = vadd.f32 %v695, %v696
        %v698 = vrot.slane %v697, 1
        %v699 = vadd.f32 %v697, %v698
        %v702 = vcombine.low %v692, %v699
        %v704 = vunpack.c.l.s4 1966171168
        %v705 = vunpack.c.0.s8 %v704
        %v706 = vlaneseq
        %v707 = vshrl.u32 %v706, 7
        %v708 = vsub.s32 %v705, %v707
        %v709 = vrot.slane %v702, %v708
        %v711 = vunpack.c.l.s4 1966171168
        %v712 = vunpack.c.0.s8 %v711
        %v713 = vlaneseq
        %v714 = vshrl.u32 %v713, 7
        %v715 = vsub.s32 %v712, %v714
        %v716 = vrot.slane %v709, %v715
        %v718 = vlaneseq
        %vm719 = vcmp.ge.s32.totalorder %v718, 0
        %vm720 = vcmp.lt.s32.totalorder %v718, 256
        %vm721 = vmand %vm719, %vm720
        %722 = vst.msk [vmem:[%s438] sm:$0x3] %vm721, %v716
        %s723 = sand.u32 %s221, 1
        %s724 = scalar_lea.sflag [#allocation4], %s723
        %s725 = sand.u32 %s221, 1
        %s726 = smul.addr %s725, 2
        %s727 = scalar_lea.vmem [#allocation10], %s726
        // Predicated region
        $region61: #{tpu_custom_call.1} parent=43 // pred_check
          %p728 = pneg %p231
        $region62: #{tpu_custom_call.1} parent=43 // pred_check_branch
          %730 = sbr.rel (%p728) target = $region64
        $region63: #{tpu_custom_call.1} parent=43 // pred_region
          %s732 = ssub.s32 32, 32
          %733 = vsyncadd %s724, %s732
          %s734 = smul.addr %s34, 2
          %s735 = smul.addr %s33, 2
          %s736 = sadd.s32 %s734, %s735
          %s737 = smul.addr %s736, 16
          %s738 = scalar_lea.hbm %s6, %s737
          %s740 = sshll.u32 %s727, 4
          %s741 = int_to_ptr.vmem [resolvable:$true] %s740
          %743 = dma.vmem_to_hbm [thread:$0]  %s741, 32, %s738, %s724
        $region64: #{tpu_custom_call.1} parent=43 // pred_fallthru
          _
      $region44: #{tpu_custom_call.1} parent=5 // pred_fallthru
        _
      %p744 = scmp.le.s32.totalorder 2, %s24
      // Predicated region
      $region65: #{tpu_custom_call.1} parent=5 // pred_check
        %p745 = pneg %p744
      $region66: #{tpu_custom_call.1} parent=5 // pred_check_branch
        %747 = sbr.rel (%p745) target = $region68
      $region67: #{tpu_custom_call.1} parent=5 // pred_region
        %s748 = ssub.s32 %s24, 2
        // Predicated region
        $region69: #{tpu_custom_call.1} parent=67 // pred_check
          %p749 = pneg %p237
        $region70: #{tpu_custom_call.1} parent=67 // pred_check_branch
          %751 = sbr.rel (%p749) target = $region72
        $region71: #{tpu_custom_call.1} parent=67 // pred_region
          %s752 = sand.u32 %s222, 1
          %s753 = scalar_lea.sflag [#allocation4], %s752
          %s754 = sand.u32 %s222, 1
          %s755 = smul.addr %s754, 2
          %s756 = scalar_lea.vmem [#allocation10], %s755
          %757 = dma.done %s753, 32
        $region72: #{tpu_custom_call.1} parent=67 // pred_fallthru
          _
      $region68: #{tpu_custom_call.1} parent=5 // pred_fallthru
        _
    $region6: #{tpu_custom_call.1} parent=1 // loop_footer
      %s28 = sadd.s32 1, %s24
    $region7: #{tpu_custom_call.1} parent=1 // loop_footer_branch
      %23 = sbr.rel target = $region3
    $region8: #{tpu_custom_call.1} parent=1 // loop_exit
      _
    %758 = vsyncpa [#allocation3], 1
    %s759 = scalar_lea.sflag [#allocation3], 1
    %760 = vsyncpa %s759, 1
    %761 = vsyncpa [#allocation6], 1
    %s762 = scalar_lea.sflag [#allocation6], 1
    %763 = vsyncpa %s762, 1
    %764 = vsyncpa [#allocation9], 1
    %s765 = scalar_lea.sflag [#allocation9], 1
    %766 = vsyncpa %s765, 1
    %767 = vsyncpa [#allocation4], 1
    %s768 = scalar_lea.sflag [#allocation4], 1
    %769 = vsyncpa %s768, 1

</llo_original>
